<compile_context>
chip_gen: v7x
topology: tpu7x:2x2x1
jax: 0.10.0
libtpu: 0.0.40
codegen_flags: <defaults>
</compile_context>

<pallas_src>
import functools

import jax
import jax.numpy as jnp
from jax.experimental import pallas as pl
from jax.experimental.pallas import tpu as pltpu

NUM_MODELS = 3
NUM_CLASSES = 1  # matches GanEnsemble(num_classes=1)
LANE = 128


def _round_up(n, m):
    return ((n + m - 1) // m) * m


def ensemble_kernel(x_ref, w1_ref, b1_ref, w2_ref, b2_ref, out_ref, acc_ref,
                    *, inv_s, num_models):
    """Grid = (batch_tiles, spatial_tiles); spatial axis is the reduction.

    x_ref  : [TB, C, TS]   input tile (spatial chunk of H*W on the lane axis)
    w1_ref : [C, N1]       fused first-layer weights (3 heads side by side)
    b1_ref : [1, N1]       fused first-layer bias
    w2_ref : [N1, NO]      block-diagonal fused output weights
    b2_ref : [1, NO]       fused output bias (first `num_models` cols valid)
    out_ref: [TB, 1]       mean(sigmoid(cat(logits)), dim=1)
    acc_ref: [TB, C, TS]   f32 partial-sum accumulator (persistent scratch)
    """
    s = pl.program_id(1)

    @pl.when(s == 0)
    def _init():
        acc_ref[...] = jnp.zeros_like(acc_ref)

    # Pure VPU add per spatial step; cross-lane reduce happens once at the end.
    acc_ref[...] += x_ref[...].astype(jnp.float32)

    @pl.when(s == pl.num_programs(1) - 1)
    def _finalize():
        # Global average pool: single XLU reduce + multiply by precomputed 1/S.
        feat = jnp.sum(acc_ref[...], axis=-1) * inv_s                 # [TB, C]

        # Fused first layer for all ensemble heads (one MXU push).
        h = jnp.dot(feat, w1_ref[...],
                    preferred_element_type=jnp.float32) + b1_ref[...]
        h = jnp.maximum(h, 0.0)                                       # [TB, N1]

        # Block-diagonal second layer: all `num_models` logits at once.
        logits = jnp.dot(h, w2_ref[...],
                         preferred_element_type=jnp.float32) + b2_ref[...]

        probs = 1.0 / (1.0 + jnp.exp(-logits))                        # sigmoid
        col = jax.lax.broadcasted_iota(jnp.int32, probs.shape, 1)
        probs = jnp.where(col < num_models, probs, 0.0)
        out_ref[...] = (jnp.sum(probs, axis=-1, keepdims=True)
                        * (1.0 / num_models)).astype(out_ref.dtype)


def pack_params(params):
    """Fuse the 3 per-model heads into padded, MXU/lane-friendly blocks."""
    w1 = params["w1"]            # [M, C, HID]
    b1 = params["b1"]            # [M, HID]
    w2 = params["w2"]            # [M, HID]
    b2 = params["b2"]            # [M, 1]
    m, c, hid = w1.shape
    n1 = _round_up(m * hid, LANE)
    no = _round_up(m, LANE)

    w1f = jnp.transpose(w1, (1, 0, 2)).reshape(c, m * hid)
    w1f = jnp.pad(w1f, ((0, 0), (0, n1 - m * hid)))
    b1f = jnp.pad(b1.reshape(1, m * hid), ((0, 0), (0, n1 - m * hid)))

    w2f = jnp.zeros((n1, no), jnp.float32)
    for i in range(m):
        w2f = w2f.at[i * hid:(i + 1) * hid, i].set(w2[i])
    b2f = jnp.zeros((1, no), jnp.float32).at[0, :m].set(b2[:, 0])
    return {"w1": w1f, "b1": b1f, "w2": w2f, "b2": b2f}


def gan_ensemble_forward(x, params, *, tile_b=8, tile_s=None):
    """x: [B, C, H, W] float (NCHW). Returns [B] float32."""
    B, C, H, W = x.shape
    S = H * W
    x3 = x.reshape(B, C, S)

    if tile_s is None:
        tile_s = 512 if S >= 512 else LANE        # >=128 lanes per DMA step
    s_pad = _round_up(S, tile_s)
    b_pad = _round_up(B, tile_b)
    if (s_pad, b_pad) != (S, B):
        x3 = jnp.pad(x3, ((0, b_pad - B), (0, 0), (0, s_pad - S)))

    fused = pack_params(params)
    w1, b1, w2, b2 = fused["w1"], fused["b1"], fused["w2"], fused["b2"]
    n1 = w1.shape[1]
    no = w2.shape[1]

    grid = (b_pad // tile_b, s_pad // tile_s)
    kernel = functools.partial(ensemble_kernel,
                               inv_s=float(1.0 / S),
                               num_models=NUM_MODELS)

    out = pl.pallas_call(
        kernel,
        out_shape=jax.ShapeDtypeStruct((b_pad, 1), jnp.float32),
        grid_spec=pltpu.PrefetchScalarGridSpec(
            num_scalar_prefetch=0,
            grid=grid,
            in_specs=[
                pl.BlockSpec((tile_b, C, tile_s), lambda b, s: (b, 0, s)),
                # Constant-index blocks: weights stay resident, no per-step DMA.
                pl.BlockSpec((C, n1), lambda b, s: (0, 0)),
                pl.BlockSpec((1, n1), lambda b, s: (0, 0)),
                pl.BlockSpec((n1, no), lambda b, s: (0, 0)),
                pl.BlockSpec((1, no), lambda b, s: (0, 0)),
            ],
            out_specs=pl.BlockSpec((tile_b, 1), lambda b, s: (b, 0)),
            scratch_shapes=[pltpu.VMEM((tile_b, C, tile_s), jnp.float32)],
        ),
        compiler_params=pltpu.CompilerParams(
            dimension_semantics=("parallel", "arbitrary"),
            vmem_limit_bytes=32 * 1024 * 1024,
        ),
    )(x3, w1, b1, w2, b2)
    return out[:B, 0]


def init_params(key, channels, hidden):
    """Deterministic synthetic weights for the three ensemble heads."""
    k1, k2, k3, k4 = jax.random.split(key, 4)
    return {
        "w1": (jax.random.normal(k1, (NUM_MODELS, channels, hidden),
                                 jnp.float32) * 0.1),
        "b1": (jax.random.normal(k2, (NUM_MODELS, hidden),
                                 jnp.float32) * 0.1),
        "w2": (jax.random.normal(k3, (NUM_MODELS, hidden),
                                 jnp.float32) * 0.1),
        "b2": (jax.random.normal(k4, (NUM_MODELS, 1),
                                 jnp.float32) * 0.1),
    }


def reference_forward(x, params):
    """Pure-JAX reference mirroring GanEnsemble.forward semantics."""
    B, C, H, W = x.shape
    feat = jnp.mean(x.reshape(B, C, H * W), axis=-1)                 # [B, C]
    logits = []
    for m in range(NUM_MODELS):
        h = jnp.maximum(feat @ params["w1"][m] + params["b1"][m], 0.0)
        logits.append(jnp.sum(h * params["w2"][m], axis=-1, keepdims=True)
                      + params["b2"][m])
    res = jnp.concatenate(logits, axis=1)                            # [B, 3]
    res = jax.nn.sigmoid(res)
    return jnp.mean(res, axis=1)                                     # [B]


if __name__ == "__main__":
    key = jax.random.PRNGKey(0)
    kx, kp, kx2, kp2 = jax.random.split(key, 4)

    # Canonical small test shape.
    B, C, H, W = 2, 4, 16, 16
    HIDDEN = 32
    x = jax.random.normal(kx, (B, C, H, W), jnp.float32)
    params = init_params(kp, C, HIDDEN)
    out = jax.block_until_ready(gan_ensemble_forward(x, params))
    ref = reference_forward(x, params)
    assert out.shape == (B,), out.shape
    assert jnp.allclose(out, ref, atol=1e-5, rtol=1e-5), (out, ref)

    # Second shape exercising the batch/spatial padding paths
    # (B not multiple of tile_b, S=400 not multiple of 128, C=3 like RGB).
    B2, C2, H2, W2 = 3, 3, 20, 20
    x2 = jax.random.normal(kx2, (B2, C2, H2, W2), jnp.float32)
    params2 = init_params(kp2, C2, HIDDEN)
    out2 = jax.block_until_ready(gan_ensemble_forward(x2, params2))
    ref2 = reference_forward(x2, params2)
    assert out2.shape == (B2,), out2.shape
    assert jnp.allclose(out2, ref2, atol=1e-5, rtol=1e-5), (out2, ref2)

    print("KERNEL_OK")
</pallas_src>

<mosaic_0001>
module attributes {stable_mosaic.version = 11 : i64} {
  func.func @ensemble_kernel(%arg0: i32, %arg1: i32, %arg2: memref<8x4x128xf32, #tpu.memory_space<vmem>>, %arg3: memref<4x128xf32, #tpu.memory_space<vmem>>, %arg4: memref<1x128xf32, #tpu.memory_space<vmem>>, %arg5: memref<128x128xf32, #tpu.memory_space<vmem>>, %arg6: memref<1x128xf32, #tpu.memory_space<vmem>>, %arg7: memref<8x1xf32, #tpu.memory_space<vmem>>, %arg8: memref<8x4x128xf32, #tpu.memory_space<vmem>>) attributes {dimension_semantics = [#tpu.dimension_semantics<parallel>, #tpu.dimension_semantics<arbitrary>], iteration_bounds = array<i64: 1, 2>, scalar_prefetch = 0 : i64, scratch_operands = 1 : i64, tpu.core_type = #tpu.core_type<tc>, window_params = [{transform_indices = @transform_0, window_bounds = array<i64: 8, 4, 128>}, {pipeline_mode = #tpu.pipeline_mode<synchronous>, transform_indices = @transform_1, window_bounds = array<i64: 4, 128>}, {pipeline_mode = #tpu.pipeline_mode<synchronous>, transform_indices = @transform_2, window_bounds = array<i64: 1, 128>}, {pipeline_mode = #tpu.pipeline_mode<synchronous>, transform_indices = @transform_3, window_bounds = array<i64: 128, 128>}, {pipeline_mode = #tpu.pipeline_mode<synchronous>, transform_indices = @transform_4, window_bounds = array<i64: 1, 128>}, {transform_indices = @transform_5, window_bounds = array<i64: 8, 1>}]} {
    %c0_i32 = arith.constant 0 : i32
    %0 = arith.cmpi eq, %arg1, %c0_i32 : i32
    %1 = arith.extui %0 : i1 to i32
    %c0_i32_0 = arith.constant 0 : i32
    %2 = arith.cmpi ne, %1, %c0_i32_0 : i32
    scf.if %2 {
      %cst = arith.constant 0.000000e+00 : f32
      %10 = vector.broadcast %cst : f32 to vector<8x4x128xf32>
      %c0_10 = arith.constant 0 : index
      %c0_11 = arith.constant 0 : index
      %c0_12 = arith.constant 0 : index
      %11 = vector.load %arg8[%c0_10, %c0_11, %c0_12] : memref<8x4x128xf32, #tpu.memory_space<vmem>>, vector<8x4x128xf32>
      tpu.vector_store %arg8[%c0_10, %c0_11, %c0_12], %10 {strides = array<i32>} : memref<8x4x128xf32, #tpu.memory_space<vmem>>, vector<8x4x128xf32>,
    } else {
    }
    %c0 = arith.constant 0 : index
    %c0_1 = arith.constant 0 : index
    %c0_2 = arith.constant 0 : index
    %3 = vector.load %arg8[%c0, %c0_1, %c0_2] : memref<8x4x128xf32, #tpu.memory_space<vmem>>, vector<8x4x128xf32>
    %c0_3 = arith.constant 0 : index
    %c0_4 = arith.constant 0 : index
    %c0_5 = arith.constant 0 : index
    %4 = vector.load %arg2[%c0_3, %c0_4, %c0_5] : memref<8x4x128xf32, #tpu.memory_space<vmem>>, vector<8x4x128xf32>
    %5 = arith.addf %3, %4 : vector<8x4x128xf32>
    %c0_6 = arith.constant 0 : index
    %c0_7 = arith.constant 0 : index
    %c0_8 = arith.constant 0 : index
    %6 = vector.load %arg8[%c0_6, %c0_7, %c0_8] : memref<8x4x128xf32, #tpu.memory_space<vmem>>, vector<8x4x128xf32>
    tpu.vector_store %arg8[%c0_6, %c0_7, %c0_8], %5 {strides = array<i32>} : memref<8x4x128xf32, #tpu.memory_space<vmem>>, vector<8x4x128xf32>,
    %c1_i32 = arith.constant 1 : i32
    %7 = arith.cmpi eq, %arg1, %c1_i32 : i32
    %8 = arith.extui %7 : i1 to i32
    %c0_i32_9 = arith.constant 0 : i32
    %9 = arith.cmpi ne, %8, %c0_i32_9 : i32
    scf.if %9 {
      %c0_10 = arith.constant 0 : index
      %c0_11 = arith.constant 0 : index
      %c0_12 = arith.constant 0 : index
      %10 = vector.load %arg8[%c0_10, %c0_11, %c0_12] : memref<8x4x128xf32, #tpu.memory_space<vmem>>, vector<8x4x128xf32>
      %cst = arith.constant dense<0.000000e+00> : vector<8x4xf32>
      %11 = vector.multi_reduction <add>, %10, %cst [2] : vector<8x4x128xf32> to vector<8x4xf32>
      %cst_13 = arith.constant 3.906250e-03 : f32
      %12 = vector.broadcast %cst_13 : f32 to vector<8x4xf32>
      %13 = arith.mulf %11, %12 : vector<8x4xf32>
      %c0_14 = arith.constant 0 : index
      %c0_15 = arith.constant 0 : index
      %14 = vector.load %arg3[%c0_14, %c0_15] : memref<4x128xf32, #tpu.memory_space<vmem>>, vector<4x128xf32>
      %cst_16 = arith.constant dense<0.000000e+00> : vector<8x128xf32>
      %15 = tpu.matmul %13, %14, %cst_16 {dimension_numbers = #tpu.dot_dimension_numbers<[1], [0], [0], [1], [0, 0, 1, 1], [], []>} : vector<8x4xf32>, vector<4x128xf32>, vector<8x128xf32> -> vector<8x128xf32>
      %c0_17 = arith.constant 0 : index
      %c0_18 = arith.constant 0 : index
      %16 = vector.load %arg4[%c0_17, %c0_18] : memref<1x128xf32, #tpu.memory_space<vmem>>, vector<1x128xf32>
      %17 = vector.broadcast %16 : vector<1x128xf32> to vector<8x128xf32>
      %18 = arith.addf %15, %17 : vector<8x128xf32>
      %cst_19 = arith.constant 0.000000e+00 : f32
      %19 = vector.broadcast %cst_19 : f32 to vector<8x128xf32>
      %20 = arith.maximumf %18, %19 : vector<8x128xf32>
      %c0_20 = arith.constant 0 : index
      %c0_21 = arith.constant 0 : index
      %21 = vector.load %arg5[%c0_20, %c0_21] : memref<128x128xf32, #tpu.memory_space<vmem>>, vector<128x128xf32>
      %cst_22 = arith.constant dense<0.000000e+00> : vector<8x128xf32>
      %22 = tpu.matmul %20, %21, %cst_22 {dimension_numbers = #tpu.dot_dimension_numbers<[1], [0], [0], [1], [0, 0, 1, 1], [], []>} : vector<8x128xf32>, vector<128x128xf32>, vector<8x128xf32> -> vector<8x128xf32>
      %c0_23 = arith.constant 0 : index
      %c0_24 = arith.constant 0 : index
      %23 = vector.load %arg6[%c0_23, %c0_24] : memref<1x128xf32, #tpu.memory_space<vmem>>, vector<1x128xf32>
      %24 = vector.broadcast %23 : vector<1x128xf32> to vector<8x128xf32>
      %25 = arith.addf %22, %24 : vector<8x128xf32>
      %cst_25 = arith.constant 0.000000e+00 : f32
      %26 = vector.broadcast %cst_25 : f32 to vector<8x128xf32>
      %27 = arith.subf %26, %25 : vector<8x128xf32>
      %28 = math.exp %27 : vector<8x128xf32>
      %cst_26 = arith.constant 1.000000e+00 : f32
      %29 = vector.broadcast %cst_26 : f32 to vector<8x128xf32>
      %30 = arith.addf %29, %28 : vector<8x128xf32>
      %cst_27 = arith.constant 1.000000e+00 : f32
      %31 = vector.broadcast %cst_27 : f32 to vector<8x128xf32>
      %32 = arith.divf %31, %30 : vector<8x128xf32>
      %33 = tpu.iota {dimensions = array<i32: 1>} : vector<8x128xi32>
      %c3_i32 = arith.constant 3 : i32
      %34 = vector.broadcast %c3_i32 : i32 to vector<8x128xi32>
      %35 = arith.cmpi slt, %33, %34 : vector<8x128xi32>
      %cst_28 = arith.constant 0.000000e+00 : f32
      %36 = vector.broadcast %cst_28 : f32 to vector<8x128xf32>
      %37 = arith.select %35, %32, %36 : vector<8x128xi1>, vector<8x128xf32>
      %cst_29 = arith.constant dense<0.000000e+00> : vector<8xf32>
      %38 = vector.multi_reduction <add>, %37, %cst_29 [1] : vector<8x128xf32> to vector<8xf32>
      %39 = vector.shape_cast %38 : vector<8xf32> to vector<8x1xf32>
      %cst_30 = arith.constant 0.333333343 : f32
      %40 = vector.broadcast %cst_30 : f32 to vector<8x1xf32>
      %41 = arith.mulf %39, %40 : vector<8x1xf32>
      %c0_31 = arith.constant 0 : index
      %c0_32 = arith.constant 0 : index
      %42 = vector.load %arg7[%c0_31, %c0_32] : memref<8x1xf32, #tpu.memory_space<vmem>>, vector<8x1xf32>
      tpu.vector_store %arg7[%c0_31, %c0_32], %41 {strides = array<i32>} : memref<8x1xf32, #tpu.memory_space<vmem>>, vector<8x1xf32>,
    } else {
    }
    return
  }
  func.func @transform_0(%arg0: i32, %arg1: i32) -> (i32, i32, i32) {
    %c0_i32 = arith.constant 0 : i32
    %c0_i32_0 = arith.constant 0 : i32
    return %arg0, %c0_i32, %arg1 : i32, i32, i32
  }
  func.func @transform_1(%arg0: i32, %arg1: i32) -> (i32, i32) {
    %c0_i32 = arith.constant 0 : i32
    %c0_i32_0 = arith.constant 0 : i32
    %c0_i32_1 = arith.constant 0 : i32
    return %c0_i32, %c0_i32_0 : i32, i32
  }
  func.func @transform_2(%arg0: i32, %arg1: i32) -> (i32, i32) {
    %c0_i32 = arith.constant 0 : i32
    %c0_i32_0 = arith.constant 0 : i32
    %c0_i32_1 = arith.constant 0 : i32
    return %c0_i32, %c0_i32_0 : i32, i32
  }
  func.func @transform_3(%arg0: i32, %arg1: i32) -> (i32, i32) {
    %c0_i32 = arith.constant 0 : i32
    %c0_i32_0 = arith.constant 0 : i32
    %c0_i32_1 = arith.constant 0 : i32
    return %c0_i32, %c0_i32_0 : i32, i32
  }
  func.func @transform_4(%arg0: i32, %arg1: i32) -> (i32, i32) {
    %c0_i32 = arith.constant 0 : i32
    %c0_i32_0 = arith.constant 0 : i32
    %c0_i32_1 = arith.constant 0 : i32
    return %c0_i32, %c0_i32_0 : i32, i32
  }
  func.func @transform_5(%arg0: i32, %arg1: i32) -> (i32, i32) {
    %c0_i32 = arith.constant 0 : i32
    %c0_i32_0 = arith.constant 0 : i32
    return %arg0, %c0_i32 : i32, i32
  }
}

</mosaic_0001>

<llo_original>
// kernel: tpu_custom_call.1
$region0: #{tpu_custom_call.1}
  #allocation0 [shape = 'u32[]', space=smem, size = 0x4, offset = 0x4, fixed_abs, tag = 'smem constant byte address 0x4 - core index']
  #allocation1 [shape = 'u32[144,128]{1,0:T(1,128)}', space=vmem, size = 0x12000, scoped, tag = 'internal scratch']
  #allocation2 [shape = 'f32[8,4,128]{2,1,0:T(4,128)}', space=vmem, size = 0x4000, scoped, tag = 'scratch operand']
  %s0 = inlined_call_operand.hbm [shape: f32[8,4,256], index: 0, kind: input, shape index: {}]
  %s1 = inlined_call_operand.hbm [shape: f32[4,128], index: 1, kind: input, shape index: {}]
  %s2 = inlined_call_operand.vmem [shape: f32[1,128], index: 2, kind: input, shape index: {}]
  %s3 = inlined_call_operand.hbm [shape: f32[128,128], index: 3, kind: input, shape index: {}]
  %s4 = inlined_call_operand.vmem [shape: f32[1,128], index: 4, kind: input, shape index: {}]
  %s5 = inlined_call_operand.vmem [shape: f32[8,1], index: 5, kind: output, shape index: {}]
  %s6 = sld [smem:[#allocation0]]
  $region73: #{tpu_custom_call.1} parent=0
    _
  %s8 = ssub.s32 1, %s6
  %s9 = scalar_select 0, %s8, %s6
  $region1: #{tpu_custom_call.1} parent=0
    #allocation3 [shape = 'u8[32768]{0}', space=vmem, size = 0x8000, scoped, tag = 'input window, operand 0']
    #allocation4 [shape = 's32[2]{0}', space=sflag, size = 0x8, scoped, tag = 'scoped memory for tpu_custom_call.1']
    #allocation5 [shape = 'u8[2048]{0}', space=vmem, size = 0x800, scoped, tag = 'input window, operand 1, single buffered']
    #allocation6 [shape = 's32[1]{0}', space=sflag, size = 0x4, scoped, tag = 'scoped memory for tpu_custom_call.1']
    #allocation7 [shape = 'u8[65536]{0}', space=vmem, size = 0x10000, scoped, tag = 'input window, operand 3, single buffered']
    %10 = vsyncpa [#allocation4], 0
    %s11 = scalar_lea.sflag [#allocation4], 1
    %12 = vsyncpa %s11, 0
    %13 = vsyncpa [#allocation6], 0
    loop: start=0, step=1, limit=4
    $region2: #{tpu_custom_call.1} parent=1 // loop_pre_header
      _
    $region3: #{tpu_custom_call.1} parent=1 // loop_header
      %s15 = sphi 0, %s19
      %p16 = scmp.ge.s32.totalorder %s15, 4
      %s22 = sphi 0, %s34
      %s23 = sphi 0, %s30
      %s24 = sphi 0, %s22
      %s25 = sphi 0, %s23
      %s26 = sphi 0, %s24
      %s27 = sphi 0, %s25
      %s39 = sphi 0, %s41
      %s42 = sphi 0, %s39
      %s43 = sphi 0, %s42
      %s59 = sphi 0, %s43
      %s63 = sphi 0, %s63
      %s65 = sphi 0, %s63
      %s66 = sphi 0, %s65
      %s80 = sphi 0, %s66
      %s84 = sphi 0, %s84
      %s86 = sphi 0, %s84
      %s87 = sphi 0, %s86
      %s101 = sphi 0, %s87
      %s105 = sphi 0, %s105
      %s107 = sphi 0, %s105
      %s108 = sphi 0, %s107
      %s122 = sphi 0, %s108
      %s126 = sphi 0, %s126
      %s128 = sphi 0, %s126
      %s129 = sphi 0, %s128
      %s143 = sphi 0, %s129
      %s149 = sphi 0, %s151
      %s152 = sphi 0, %s149
      %s153 = sphi 0, %s152
      %s169 = sphi 0, %s153
    $region4: #{tpu_custom_call.1} parent=1 // loop_header_branch
      %18 = sbr.rel (%p16) target = $region8
    $region5: #{tpu_custom_call.1} parent=1 // loop_body
      %s20 = ssub.s32 %s15, 1
      %s21 = ssub.s32 %s15, 2
      %s28 = sadd.s32 1, %s23
      %p29 = scmp.ge.s32.totalorder %s28, 2
      %s30 = scalar_select %p29, 0, %s28
      %s31 = sadd.s32 1, %s22
      %s32 = scalar_select %p29, %s31, %s22
      %p33 = scmp.ge.s32.totalorder %s32, 1
      %s34 = scalar_select %p33, 0, %s32
      %s35 = ssub.s32 %s22, %s34
      %s36 = ssub.s32 %s23, %s30
      %s37 = sor.u32 %s35, %s36
      %p38 = scmp.eq.s32.totalorder %s37, 0
      %s40 = sadd.s32 %s39, 1
      %s41 = scalar_select %p38, %s39, %s40
      %p44 = pneg %p38
      %p45 = scmp.eq.s32.totalorder %s15, 1
      %p46 = por %p44, %p45
      %p47 = scmp.ne.s32.totalorder %s39, %s42
      %p48 = scmp.eq.s32.totalorder %s15, 0
      %p49 = por %p47, %p48
      %p50 = scmp.ne.s32.totalorder %s39, %s42
      %p51 = scmp.eq.s32.totalorder %s20, 1
      %p52 = por %p50, %p51
      %p53 = scmp.ne.s32.totalorder %s42, %s43
      %p54 = scmp.eq.s32.totalorder %s20, 0
      %p55 = por %p53, %p54
      %p56 = scmp.ne.s32.totalorder %s42, %s43
      %p57 = scmp.eq.s32.totalorder %s21, 1
      %p58 = por %p56, %p57
      %p60 = scmp.ne.s32.totalorder %s43, %s59
      %p61 = scmp.eq.s32.totalorder %s21, 0
      %p62 = por %p60, %p61
      %s64 = sadd.s32 %s63, 1
      %p67 = scmp.eq.s32.totalorder %s15, 1
      %p68 = scmp.ne.s32.totalorder %s63, %s65
      %p69 = scmp.eq.s32.totalorder %s15, 0
      %p70 = por %p68, %p69
      %p71 = scmp.ne.s32.totalorder %s63, %s65
      %p72 = scmp.eq.s32.totalorder %s20, 1
      %p73 = por %p71, %p72
      %p74 = scmp.ne.s32.totalorder %s65, %s66
      %p75 = scmp.eq.s32.totalorder %s20, 0
      %p76 = por %p74, %p75
      %p77 = scmp.ne.s32.totalorder %s65, %s66
      %p78 = scmp.eq.s32.totalorder %s21, 1
      %p79 = por %p77, %p78
      %p81 = scmp.ne.s32.totalorder %s66, %s80
      %p82 = scmp.eq.s32.totalorder %s21, 0
      %p83 = por %p81, %p82
      %s85 = sadd.s32 %s84, 1
      %p88 = scmp.eq.s32.totalorder %s15, 1
      %p89 = scmp.ne.s32.totalorder %s84, %s86
      %p90 = scmp.eq.s32.totalorder %s15, 0
      %p91 = por %p89, %p90
      %p92 = scmp.ne.s32.totalorder %s84, %s86
      %p93 = scmp.eq.s32.totalorder %s20, 1
      %p94 = por %p92, %p93
      %p95 = scmp.ne.s32.totalorder %s86, %s87
      %p96 = scmp.eq.s32.totalorder %s20, 0
      %p97 = por %p95, %p96
      %p98 = scmp.ne.s32.totalorder %s86, %s87
      %p99 = scmp.eq.s32.totalorder %s21, 1
      %p100 = por %p98, %p99
      %p102 = scmp.ne.s32.totalorder %s87, %s101
      %p103 = scmp.eq.s32.totalorder %s21, 0
      %p104 = por %p102, %p103
      %s106 = sadd.s32 %s105, 1
      %p109 = scmp.eq.s32.totalorder %s15, 1
      %p110 = scmp.ne.s32.totalorder %s105, %s107
      %p111 = scmp.eq.s32.totalorder %s15, 0
      %p112 = por %p110, %p111
      %p113 = scmp.ne.s32.totalorder %s105, %s107
      %p114 = scmp.eq.s32.totalorder %s20, 1
      %p115 = por %p113, %p114
      %p116 = scmp.ne.s32.totalorder %s107, %s108
      %p117 = scmp.eq.s32.totalorder %s20, 0
      %p118 = por %p116, %p117
      %p119 = scmp.ne.s32.totalorder %s107, %s108
      %p120 = scmp.eq.s32.totalorder %s21, 1
      %p121 = por %p119, %p120
      %p123 = scmp.ne.s32.totalorder %s108, %s122
      %p124 = scmp.eq.s32.totalorder %s21, 0
      %p125 = por %p123, %p124
      %s127 = sadd.s32 %s126, 1
      %p130 = scmp.eq.s32.totalorder %s15, 1
      %p131 = scmp.ne.s32.totalorder %s126, %s128
      %p132 = scmp.eq.s32.totalorder %s15, 0
      %p133 = por %p131, %p132
      %p134 = scmp.ne.s32.totalorder %s126, %s128
      %p135 = scmp.eq.s32.totalorder %s20, 1
      %p136 = por %p134, %p135
      %p137 = scmp.ne.s32.totalorder %s128, %s129
      %p138 = scmp.eq.s32.totalorder %s20, 0
      %p139 = por %p137, %p138
      %p140 = scmp.ne.s32.totalorder %s128, %s129
      %p141 = scmp.eq.s32.totalorder %s21, 1
      %p142 = por %p140, %p141
      %p144 = scmp.ne.s32.totalorder %s129, %s143
      %p145 = scmp.eq.s32.totalorder %s21, 0
      %p146 = por %p144, %p145
      %s147 = ssub.s32 %s22, %s34
      %p148 = scmp.eq.s32.totalorder %s147, 0
      %s150 = sadd.s32 %s149, 1
      %s151 = scalar_select %p148, %s149, %s150
      %p154 = pneg %p148
      %p155 = scmp.eq.s32.totalorder %s15, 1
      %p156 = por %p154, %p155
      %p157 = scmp.ne.s32.totalorder %s149, %s152
      %p158 = scmp.eq.s32.totalorder %s15, 0
      %p159 = por %p157, %p158
      %p160 = scmp.ne.s32.totalorder %s149, %s152
      %p161 = scmp.eq.s32.totalorder %s20, 1
      %p162 = por %p160, %p161
      %p163 = scmp.ne.s32.totalorder %s152, %s153
      %p164 = scmp.eq.s32.totalorder %s20, 0
      %p165 = por %p163, %p164
      %p166 = scmp.ne.s32.totalorder %s152, %s153
      %p167 = scmp.eq.s32.totalorder %s21, 1
      %p168 = por %p166, %p167
      %p170 = scmp.ne.s32.totalorder %s153, %s169
      %p171 = scmp.eq.s32.totalorder %s21, 0
      %p172 = por %p170, %p171
      %p173 = scmp.le.s32.totalorder 1, %s15
      %p174 = scmp.lt.s32.totalorder %s15, 3
      %p175 = pnand %p173, %p174
      %p176 = pneg %p175
      // Predicated region
      $region9: #{tpu_custom_call.1} parent=5 // pred_check
        _
      $region10: #{tpu_custom_call.1} parent=5 // pred_check_branch
        %178 = sbr.rel (%p175) target = $region12
      $region11: #{tpu_custom_call.1} parent=5 // pred_region
        %s179 = ssub.s32 %s15, 1
        // Predicated region
        $region13: #{tpu_custom_call.1} parent=11 // pred_check
          %p180 = pneg %p76
        $region14: #{tpu_custom_call.1} parent=11 // pred_check_branch
          %182 = sbr.rel (%p180) target = $region16
        $region15: #{tpu_custom_call.1} parent=11 // pred_region
          %s184 = ssub.s32 64, 64
          %185 = vsyncadd [#allocation6], %s184
          %s187 = sshll.u32 [#allocation5], 4
          %s188 = int_to_ptr.vmem [resolvable:$true] %s187
          %190 = dma.hbm_to_vmem [thread:$0]  %s1, 64, %s188, [#allocation6]
        $region16: #{tpu_custom_call.1} parent=11 // pred_fallthru
          _
        // Predicated region
        $region17: #{tpu_custom_call.1} parent=11 // pred_check
          %p191 = pneg %p97
        $region18: #{tpu_custom_call.1} parent=11 // pred_check_branch
          %193 = sbr.rel (%p191) target = $region20
        $region19: #{tpu_custom_call.1} parent=11 // pred_region
          _
        $region20: #{tpu_custom_call.1} parent=11 // pred_fallthru
          _
        // Predicated region
        $region21: #{tpu_custom_call.1} parent=11 // pred_check
          %p194 = pneg %p118
        $region22: #{tpu_custom_call.1} parent=11 // pred_check_branch
          %196 = sbr.rel (%p194) target = $region24
        $region23: #{tpu_custom_call.1} parent=11 // pred_region
          %s198 = ssub.s32 2048, 2048
          %199 = vsyncadd [#allocation6], %s198
          %s200 = sshll.u32 [#allocation7], 4
          %s201 = int_to_ptr.vmem [resolvable:$true] %s200
          %206 = dma.hbm_to_vmem [thread:$0]  %s3, 2048, %s201, [#allocation6], 128, 128, 8
        $region24: #{tpu_custom_call.1} parent=11 // pred_fallthru
          _
        // Predicated region
        $region25: #{tpu_custom_call.1} parent=11 // pred_check
          %p207 = pneg %p139
        $region26: #{tpu_custom_call.1} parent=11 // pred_check_branch
          %209 = sbr.rel (%p207) target = $region28
        $region27: #{tpu_custom_call.1} parent=11 // pred_region
          _
        $region28: #{tpu_custom_call.1} parent=11 // pred_fallthru
          _
      $region12: #{tpu_custom_call.1} parent=5 // pred_fallthru
        _
      %p210 = scmp.lt.s32.totalorder %s15, 2
      // Predicated region
      $region29: #{tpu_custom_call.1} parent=5 // pred_check
        %p211 = pneg %p210
      $region30: #{tpu_custom_call.1} parent=5 // pred_check_branch
        %213 = sbr.rel (%p211) target = $region32
      $region31: #{tpu_custom_call.1} parent=5 // pred_region
        // Predicated region
        $region33: #{tpu_custom_call.1} parent=31 // pred_check
          %p214 = pneg %p49
        $region34: #{tpu_custom_call.1} parent=31 // pred_check_branch
          %216 = sbr.rel (%p214) target = $region36
        $region35: #{tpu_custom_call.1} parent=31 // pred_region
          %s217 = sand.u32 %s39, 1
          %s218 = scalar_lea.sflag [#allocation4], %s217
          %s219 = sand.u32 %s39, 1
          %s220 = smul.addr %s219, 32
          %s221 = scalar_lea.vmem [#allocation3], %s220
          %s222 = smul.u32 8, %s22
          %s224 = ssub.s32 512, 512
          %225 = vsyncadd %s218, %s224
          %s226 = smul.addr %s222, 2
          %s227 = sadd.s32 %s23, %s226
          %s228 = smul.addr %s227, 64
          %s229 = scalar_lea.hbm %s0, %s228
          %s230 = sshll.u32 %s221, 4
          %s231 = int_to_ptr.vmem [resolvable:$true] %s230
          %236 = dma.hbm_to_vmem [thread:$0]  %s229, 512, %s231, %s218, 128, 64, 4
        $region36: #{tpu_custom_call.1} parent=31 // pred_fallthru
          _
      $region32: #{tpu_custom_call.1} parent=5 // pred_fallthru
        _
      %p237 = scmp.le.s32.totalorder 1, %s15
      %p238 = scmp.lt.s32.totalorder %s15, 3
      %p239 = pnand %p237, %p238
      %p240 = pneg %p239
      // Predicated region
      $region37: #{tpu_custom_call.1} parent=5 // pred_check
        _
      $region38: #{tpu_custom_call.1} parent=5 // pred_check_branch
        %242 = sbr.rel (%p239) target = $region40
      $region39: #{tpu_custom_call.1} parent=5 // pred_region
        %s243 = ssub.s32 %s15, 1
        %s244 = sand.u32 %s42, 1
        %s245 = scalar_lea.sflag [#allocation4], %s244
        %s246 = sand.u32 %s42, 1
        %s247 = smul.addr %s246, 32
        %s248 = scalar_lea.vmem [#allocation3], %s247
        // Predicated region
        $region41: #{tpu_custom_call.1} parent=39 // pred_check
          %p249 = pneg %p55
        $region42: #{tpu_custom_call.1} parent=39 // pred_check_branch
          %251 = sbr.rel (%p249) target = $region44
        $region43: #{tpu_custom_call.1} parent=39 // pred_region
          %252 = dma.done %s245, 512
        $region44: #{tpu_custom_call.1} parent=39 // pred_fallthru
          _
        // Predicated region
        $region45: #{tpu_custom_call.1} parent=39 // pred_check
          %p253 = pneg %p76
        $region46: #{tpu_custom_call.1} parent=39 // pred_check_branch
          %255 = sbr.rel (%p253) target = $region48
        $region47: #{tpu_custom_call.1} parent=39 // pred_region
          %256 = dma.done [#allocation6], 64
        $region48: #{tpu_custom_call.1} parent=39 // pred_fallthru
          _
        // Predicated region
        $region49: #{tpu_custom_call.1} parent=39 // pred_check
          %p257 = pneg %p118
        $region50: #{tpu_custom_call.1} parent=39 // pred_check_branch
          %259 = sbr.rel (%p257) target = $region52
        $region51: #{tpu_custom_call.1} parent=39 // pred_region
          %260 = dma.done [#allocation6], 2048
        $region52: #{tpu_custom_call.1} parent=39 // pred_fallthru
          _
        %s261 = sand.u32 %s42, 1
        %s262 = scalar_lea.sflag [#allocation4], %s261
        %s263 = sand.u32 %s42, 1
        %s264 = smul.addr %s263, 32
        %s265 = scalar_lea.vmem [#allocation3], %s264
        %p266 = pneg %p55
        %p267 = pneg %p52
        %p268 = pneg %p76
        %p269 = pneg %p73
        %p270 = pneg %p97
        %p271 = pneg %p94
        %p272 = pneg %p118
        %p273 = pneg %p115
        %p274 = pneg %p139
        %p275 = pneg %p136
        %p276 = pneg %p165
        %p277 = pneg %p162
        %p278 = scmp.lt.s32.totalorder %s24, 0
        %s279 = scalar_select %p278, %s24, 0
        %s280 = smul.addr %s279, 8
        %s281 = scalar_lea.vmem %s5, %s280
        %s282 = smul.u32 8, %s24
        %p283 = scmp.lt.s32.totalorder %s24, 0
        %s284 = scalar_select %p283, %s24, 0
        %s285 = smul.addr %s284, 8
        %s286 = scalar_lea.vmem %s5, %s285
        %p287 = scmp.eq.s32.totalorder %s25, 0
        // Predicated region
        $region53: #{tpu_custom_call.1} parent=39 // pred_check
          %p288 = pneg %p287
        $region54: #{tpu_custom_call.1} parent=39 // pred_check_branch
          %290 = sbr.rel (%p288) target = $region56
        $region55: #{tpu_custom_call.1} parent=39 // pred_region
          %291 = vst [vmem:[#allocation2] sm:$0xf] 0.0
          %292 = vst [vmem:[#allocation2 + $0x4] sm:$0xf] 0.0
          %293 = vst [vmem:[#allocation2 + $0x8] sm:$0xf] 0.0
          %294 = vst [vmem:[#allocation2 + $0xc] sm:$0xf] 0.0
          %295 = vst [vmem:[#allocation2 + $0x10] sm:$0xf] 0.0
          %296 = vst [vmem:[#allocation2 + $0x14] sm:$0xf] 0.0
          %297 = vst [vmem:[#allocation2 + $0x18] sm:$0xf] 0.0
          %298 = vst [vmem:[#allocation2 + $0x1c] sm:$0xf] 0.0
        $region56: #{tpu_custom_call.1} parent=39 // pred_fallthru
          _
        %v299 = vld [vmem:[#allocation2] sm:$0xf]
        %v300 = vld [vmem:[#allocation2 + $0x4] sm:$0xf]
        %v301 = vld [vmem:[#allocation2 + $0x8] sm:$0xf]
        %v302 = vld [vmem:[#allocation2 + $0xc] sm:$0xf]
        %v303 = vld [vmem:[#allocation2 + $0x10] sm:$0xf]
        %v304 = vld [vmem:[#allocation2 + $0x14] sm:$0xf]
        %v305 = vld [vmem:[#allocation2 + $0x18] sm:$0xf]
        %v306 = vld [vmem:[#allocation2 + $0x1c] sm:$0xf]
        %v307 = vld [vmem:[%s248] sm:$0xf]
        %v308 = vld [vmem:[%s248 + $0x4] sm:$0xf]
        %v309 = vld [vmem:[%s248 + $0x8] sm:$0xf]
        %v310 = vld [vmem:[%s248 + $0xc] sm:$0xf]
        %v311 = vld [vmem:[%s248 + $0x10] sm:$0xf]
        %v312 = vld [vmem:[%s248 + $0x14] sm:$0xf]
        %v313 = vld [vmem:[%s248 + $0x18] sm:$0xf]
        %v314 = vld [vmem:[%s248 + $0x1c] sm:$0xf]
        %v315 = vadd.f32 %v299, %v307
        %v316 = vadd.f32 %v300, %v308
        %v317 = vadd.f32 %v301, %v309
        %v318 = vadd.f32 %v302, %v310
        %v319 = vadd.f32 %v303, %v311
        %v320 = vadd.f32 %v304, %v312
        %v321 = vadd.f32 %v305, %v313
        %v322 = vadd.f32 %v306, %v314
        %323 = vst [vmem:[#allocation2] sm:$0xf] %v315
        %324 = vst [vmem:[#allocation2 + $0x4] sm:$0xf] %v316
        %325 = vst [vmem:[#allocation2 + $0x8] sm:$0xf] %v317
        %326 = vst [vmem:[#allocation2 + $0xc] sm:$0xf] %v318
        %327 = vst [vmem:[#allocation2 + $0x10] sm:$0xf] %v319
        %328 = vst [vmem:[#allocation2 + $0x14] sm:$0xf] %v320
        %329 = vst [vmem:[#allocation2 + $0x18] sm:$0xf] %v321
        %330 = vst [vmem:[#allocation2 + $0x1c] sm:$0xf] %v322
        %p331 = scmp.eq.s32.totalorder %s25, 1
        // Predicated region
        $region57: #{tpu_custom_call.1} parent=39 // pred_check
          %p332 = pneg %p331
        $region58: #{tpu_custom_call.1} parent=39 // pred_check_branch
          %334 = sbr.rel (%p332) target = $region60
        $region59: #{tpu_custom_call.1} parent=39 // pred_region
          %v335 = vld [vmem:[#allocation2] sm:$0xf]
          %v336 = vld [vmem:[#allocation2 + $0x4] sm:$0xf]
          %v337 = vld [vmem:[#allocation2 + $0x8] sm:$0xf]
          %v338 = vld [vmem:[#allocation2 + $0xc] sm:$0xf]
          %v339 = vld [vmem:[#allocation2 + $0x10] sm:$0xf]
          %v340 = vld [vmem:[#allocation2 + $0x14] sm:$0xf]
          %v341 = vld [vmem:[#allocation2 + $0x18] sm:$0xf]
          %v342 = vld [vmem:[#allocation2 + $0x1c] sm:$0xf]
          %vm343 = vcmask 1043456
          %v344 = vsel %vm343, %v335, 0.0
          %345 = vadd.xlane.f32.xlu0 %v344
          %v346 = vpop.xlane.xlu0 %345
          %v347 = vsel %vm343, %v336, 0.0
          %348 = vadd.xlane.f32.xlu0 %v347
          %v349 = vpop.xlane.xlu0 %348
          %v350 = vsel %vm343, %v337, 0.0
          %351 = vadd.xlane.f32.xlu0 %v350
          %v352 = vpop.xlane.xlu0 %351
          %v353 = vsel %vm343, %v338, 0.0
          %354 = vadd.xlane.f32.xlu0 %v353
          %v355 = vpop.xlane.xlu0 %354
          %v356 = vsel %vm343, %v339, 0.0
          %357 = vadd.xlane.f32.xlu0 %v356
          %v358 = vpop.xlane.xlu0 %357
          %v359 = vsel %vm343, %v340, 0.0
          %360 = vadd.xlane.f32.xlu0 %v359
          %v361 = vpop.xlane.xlu0 %360
          %v362 = vsel %vm343, %v341, 0.0
          %363 = vadd.xlane.f32.xlu0 %v362
          %v364 = vpop.xlane.xlu0 %363
          %v365 = vsel %vm343, %v342, 0.0
          %366 = vadd.xlane.f32.xlu0 %v365
          %v367 = vpop.xlane.xlu0 %366
          %v368 = vmul.f32 %v346, 0.00390625
          %v369 = vmul.f32 %v349, 0.00390625
          %v370 = vmul.f32 %v352, 0.00390625
          %v371 = vmul.f32 %v355, 0.00390625
          %v372 = vmul.f32 %v358, 0.00390625
          %v373 = vmul.f32 %v361, 0.00390625
          %v374 = vmul.f32 %v364, 0.00390625
          %v375 = vmul.f32 %v367, 0.00390625
          %v376 = vld [vmem:[#allocation5] sm:$0xf]
          %v377 = vld [vmem:[%s2] sm:$0x1]
          %v379 = vlaneseq
          %v380 = vshrl.u32 %v379, 7
          %v381 = vsub.s32 0, %v380
          %v382 = vrot.slane %v377, %v381
          %v392 = vlaneseq
          %v393 = vand.u32 %v392, 127
          %v394 = vlaneseq
          %v395 = vshrl.u32 %v394, 7
          %v396 = vsub.s32 %v393, %v395
          %v397 = vrot.slane %v368, %v396
          %v398 = vlaneseq
          %v399 = vshrl.u32 %v398, 7
          %v400 = vsub.s32 %v393, %v399
          %v401 = vrot.slane %v369, %v400
          %v402 = vlaneseq
          %v403 = vshrl.u32 %v402, 7
          %v404 = vsub.s32 %v393, %v403
          %v405 = vrot.slane %v370, %v404
          %v406 = vlaneseq
          %v407 = vshrl.u32 %v406, 7
          %v408 = vsub.s32 %v393, %v407
          %v409 = vrot.slane %v371, %v408
          %v410 = vlaneseq
          %v411 = vshrl.u32 %v410, 7
          %v412 = vsub.s32 %v393, %v411
          %v413 = vrot.slane %v372, %v412
          %v414 = vlaneseq
          %v415 = vshrl.u32 %v414, 7
          %v416 = vsub.s32 %v393, %v415
          %v417 = vrot.slane %v373, %v416
          %v418 = vlaneseq
          %v419 = vshrl.u32 %v418, 7
          %v420 = vsub.s32 %v393, %v419
          %v421 = vrot.slane %v374, %v420
          %v422 = vlaneseq
          %v423 = vshrl.u32 %v422, 7
          %v424 = vsub.s32 %v393, %v423
          %v425 = vrot.slane %v375, %v424
          %vm426 = vcmask 1041409
          %v427 = vsel %vm426, %v401, %v397
          %vm428 = vcmask 1042434
          %v429 = vsel %vm428, %v405, %v427
          %vm430 = vcmask 1043459
          %v431 = vsel %vm430, %v409, %v429
          %vm432 = vcmask 1044484
          %v433 = vsel %vm432, %v413, %v431
          %vm434 = vcmask 1045509
          %v435 = vsel %vm434, %v417, %v433
          %vm436 = vcmask 1046534
          %v437 = vsel %vm436, %v421, %v435
          %vm438 = vcmask 1047559
          %v439 = vsel %vm438, %v425, %v437
          %vm440 = vcmask 31744
          %v441 = vsel %vm440, %v439, 0
          %v444 = vsel %vm343, %v376, 0
          %446 = vmatprep.subr.mxu0 0.0
          %447 = vmatpush1.msra.mxu0 %v444
          %448 = vmatprep.subr.mxu0 0.0
          %449 = vmatpush1.msra.mxu0 0.0
          %450 = vmatprep.subr.mxu0 0.0
          %451 = vmatpush1.msra.mxu0 0.0
          %452 = vmatprep.subr.mxu0 0.0
          %453 = vmatpush1.msra.mxu0 0.0
          %454 = vmatprep.subr.mxu0 0.0
          %455 = vmatpush1.msra.mxu0 0.0
          %456 = vmatprep.subr.mxu0 0.0
          %457 = vmatpush1.msra.mxu0 0.0
          %458 = vmatprep.subr.mxu0 0.0
          %459 = vmatpush1.msra.mxu0 0.0
          %460 = vmatprep.subr.mxu0 0.0
          %461 = vmatpush1.msra.mxu0 0.0
          %462 = vmatprep.subr.mxu0 0.0
          %463 = vmatpush1.msra.mxu0 0.0
          %464 = vmatprep.subr.mxu0 0.0
          %465 = vmatpush1.msra.mxu0 0.0
          %466 = vmatprep.subr.mxu0 0.0
          %467 = vmatpush1.msra.mxu0 0.0
          %468 = vmatprep.subr.mxu0 0.0
          %469 = vmatpush1.msra.mxu0 0.0
          %470 = vmatprep.subr.mxu0 0.0
          %471 = vmatpush1.msra.mxu0 0.0
          %472 = vmatprep.subr.mxu0 0.0
          %473 = vmatpush1.msra.mxu0 0.0
          %474 = vmatprep.subr.mxu0 0.0
          %475 = vmatpush1.msra.mxu0 0.0
          %476 = vmatprep.subr.mxu0 0.0
          %477 = vmatpush1.msra.mxu0 0.0
          %478 = vmatprep.subr.mxu0 0.0
          %479 = vmatpush1.msra.mxu0 0.0
          %480 = vmatprep.subr.mxu0 0.0
          %481 = vmatpush1.msra.mxu0 0.0
          %482 = vmatprep.subr.mxu0 0.0
          %483 = vmatpush1.msra.mxu0 0.0
          %484 = vmatprep.subr.mxu0 0.0
          %485 = vmatpush1.msra.mxu0 0.0
          %486 = vmatprep.subr.mxu0 0.0
          %487 = vmatpush1.msra.mxu0 0.0
          %488 = vmatprep.subr.mxu0 0.0
          %489 = vmatpush1.msra.mxu0 0.0
          %490 = vmatprep.subr.mxu0 0.0
          %491 = vmatpush1.msra.mxu0 0.0
          %492 = vmatprep.subr.mxu0 0.0
          %493 = vmatpush1.msra.mxu0 0.0
          %494 = vmatprep.subr.mxu0 0.0
          %495 = vmatpush1.msra.mxu0 0.0
          %496 = vmatprep.subr.mxu0 0.0
          %497 = vmatpush1.msra.mxu0 0.0
          %498 = vmatprep.subr.mxu0 0.0
          %499 = vmatpush1.msra.mxu0 0.0
          %500 = vmatprep.subr.mxu0 0.0
          %501 = vmatpush1.msra.mxu0 0.0
          %502 = vmatprep.subr.mxu0 0.0
          %503 = vmatpush1.msra.mxu0 0.0
          %504 = vmatprep.subr.mxu0 0.0
          %505 = vmatpush1.msra.mxu0 0.0
          %506 = vmatprep.subr.mxu0 0.0
          %507 = vmatpush1.msra.mxu0 0.0
          %508 = vmatprep.subr.mxu0 0.0
          %509 = vmatpush1.msra.mxu0 0.0
          %510 = vmatprep.mubr.f32.mxu0 0.0
          %511 = vmatmul.mubr.f32.gmra.mrb[0].mxu0 %v441
          %v512 = vpop.f32.mrb[0].mxu0
          %v513 = vadd.f32 %v382, %v512
          %v514 = vpop.f32.mrb[0].mxu0
          %515 = vdwg.mxu0
          %v516 = vmax.f32 %v513, 0.0
          %v517 = vld [vmem:[#allocation7] sm:$0xff]
          %v518 = vld [vmem:[#allocation7 + $0x8] sm:$0xff]
          %v519 = vld [vmem:[#allocation7 + $0x10] sm:$0xff]
          %v520 = vld [vmem:[#allocation7 + $0x18] sm:$0xff]
          %v521 = vld [vmem:[#allocation7 + $0x20] sm:$0xff]
          %v522 = vld [vmem:[#allocation7 + $0x28] sm:$0xff]
          %v523 = vld [vmem:[#allocation7 + $0x30] sm:$0xff]
          %v524 = vld [vmem:[#allocation7 + $0x38] sm:$0xff]
          %v525 = vld [vmem:[#allocation7 + $0x40] sm:$0xff]
          %v526 = vld [vmem:[#allocation7 + $0x48] sm:$0xff]
          %v527 = vld [vmem:[#allocation7 + $0x50] sm:$0xff]
          %v528 = vld [vmem:[#allocation7 + $0x58] sm:$0xff]
          %v529 = vld [vmem:[#allocation7 + $0x60] sm:$0xff]
          %v530 = vld [vmem:[#allocation7 + $0x68] sm:$0xff]
          %v531 = vld [vmem:[#allocation7 + $0x70] sm:$0xff]
          %v532 = vld [vmem:[#allocation7 + $0x78] sm:$0xff]
          %v533 = vld [vmem:[%s4] sm:$0x1]
          %v535 = vlaneseq
          %v536 = vshrl.u32 %v535, 7
          %v537 = vsub.s32 0, %v536
          %v538 = vrot.slane %v533, %v537
          %540 = vmatprep.subr.mxu0 0.0
          %541 = vmatpush1.msra.mxu0 %v517
          %542 = vmatprep.subr.mxu0 0.0
          %543 = vmatpush1.msra.mxu0 %v518
          %544 = vmatprep.subr.mxu0 0.0
          %545 = vmatpush1.msra.mxu0 %v519
          %546 = vmatprep.subr.mxu0 0.0
          %547 = vmatpush1.msra.mxu0 %v520
          %548 = vmatprep.subr.mxu0 0.0
          %549 = vmatpush1.msra.mxu0 %v521
          %550 = vmatprep.subr.mxu0 0.0
          %551 = vmatpush1.msra.mxu0 %v522
          %552 = vmatprep.subr.mxu0 0.0
          %553 = vmatpush1.msra.mxu0 %v523
          %554 = vmatprep.subr.mxu0 0.0
          %555 = vmatpush1.msra.mxu0 %v524
          %556 = vmatprep.subr.mxu0 0.0
          %557 = vmatpush1.msra.mxu0 %v525
          %558 = vmatprep.subr.mxu0 0.0
          %559 = vmatpush1.msra.mxu0 %v526
          %560 = vmatprep.subr.mxu0 0.0
          %561 = vmatpush1.msra.mxu0 %v527
          %562 = vmatprep.subr.mxu0 0.0
          %563 = vmatpush1.msra.mxu0 %v528
          %564 = vmatprep.subr.mxu0 0.0
          %565 = vmatpush1.msra.mxu0 %v529
          %566 = vmatprep.subr.mxu0 0.0
          %567 = vmatpush1.msra.mxu0 %v530
          %568 = vmatprep.subr.mxu0 0.0
          %569 = vmatpush1.msra.mxu0 %v531
          %570 = vmatprep.subr.mxu0 0.0
          %571 = vmatpush1.msra.mxu0 %v532
          %572 = vmatprep.subr.mxu0 0.0
          %573 = vmatpush1.msra.mxu0 0.0
          %574 = vmatprep.subr.mxu0 0.0
          %575 = vmatpush1.msra.mxu0 0.0
          %576 = vmatprep.subr.mxu0 0.0
          %577 = vmatpush1.msra.mxu0 0.0
          %578 = vmatprep.subr.mxu0 0.0
          %579 = vmatpush1.msra.mxu0 0.0
          %580 = vmatprep.subr.mxu0 0.0
          %581 = vmatpush1.msra.mxu0 0.0
          %582 = vmatprep.subr.mxu0 0.0
          %583 = vmatpush1.msra.mxu0 0.0
          %584 = vmatprep.subr.mxu0 0.0
          %585 = vmatpush1.msra.mxu0 0.0
          %586 = vmatprep.subr.mxu0 0.0
          %587 = vmatpush1.msra.mxu0 0.0
          %588 = vmatprep.subr.mxu0 0.0
          %589 = vmatpush1.msra.mxu0 0.0
          %590 = vmatprep.subr.mxu0 0.0
          %591 = vmatpush1.msra.mxu0 0.0
          %592 = vmatprep.subr.mxu0 0.0
          %593 = vmatpush1.msra.mxu0 0.0
          %594 = vmatprep.subr.mxu0 0.0
          %595 = vmatpush1.msra.mxu0 0.0
          %596 = vmatprep.subr.mxu0 0.0
          %597 = vmatpush1.msra.mxu0 0.0
          %598 = vmatprep.subr.mxu0 0.0
          %599 = vmatpush1.msra.mxu0 0.0
          %600 = vmatprep.subr.mxu0 0.0
          %601 = vmatpush1.msra.mxu0 0.0
          %602 = vmatprep.subr.mxu0 0.0
          %603 = vmatpush1.msra.mxu0 0.0
          %604 = vmatprep.mubr.f32.mxu0 0.0
          %605 = vmatmul.mubr.f32.gmra.mrb[0].mxu0 %v516
          %v606 = vpop.f32.mrb[0].mxu0
          %v607 = vadd.f32 %v538, %v606
          %v608 = vpop.f32.mrb[0].mxu0
          %609 = vdwg.mxu0
          %v610 = vsub.f32 0.0, %v607
          %v611 = vmul.f32 %v610, 1.442695
          %v612 = vpow.pop %v611
          %v613 = vadd.f32 %v612, 1.0
          %v614 = vrcp.pop %v613
          %v615 = vmul.f32 1.0, %v614
          %vm616 = vcmp.lt.s32.totalorder %v393, 3
          %v617 = vsel %vm616, %v615, 0.0
          %618 = vadd.xlane.f32.xlu0 %v617
          %v619 = vpop.xlane.xlu0 %618
          %v620 = vmul.f32 %v619, 0.33333334
          %vm621 = vcmask 7168
          %622 = vst.msk [vmem:[%s286] sm:$0xff] %vm621, %v620
        $region60: #{tpu_custom_call.1} parent=39 // pred_fallthru
          _
        %p623 = scmp.lt.s32.totalorder %s24, 0
        %s624 = scalar_select %p623, %s24, 0
        %s625 = smul.addr %s624, 8
        %s626 = scalar_lea.vmem %s5, %s625
        // Predicated region
        $region61: #{tpu_custom_call.1} parent=39 // pred_check
          %p627 = pneg %p162
        $region62: #{tpu_custom_call.1} parent=39 // pred_check_branch
          %629 = sbr.rel (%p627) target = $region64
        $region63: #{tpu_custom_call.1} parent=39 // pred_region
          _
        $region64: #{tpu_custom_call.1} parent=39 // pred_fallthru
          _
        // Predicated region
        $region65: #{tpu_custom_call.1} parent=39 // pred_check
          %p630 = pneg %p162
        $region66: #{tpu_custom_call.1} parent=39 // pred_check_branch
          %632 = sbr.rel (%p630) target = $region68
        $region67: #{tpu_custom_call.1} parent=39 // pred_region
          %p633 = scmp.lt.s32.totalorder %s24, 0
          %s634 = scalar_select %p633, %s24, 0
          %s635 = smul.addr %s634, 8
          %s636 = scalar_lea.vmem %s5, %s635
        $region68: #{tpu_custom_call.1} parent=39 // pred_fallthru
          _
      $region40: #{tpu_custom_call.1} parent=5 // pred_fallthru
        _
      %p637 = scmp.le.s32.totalorder 2, %s15
      // Predicated region
      $region69: #{tpu_custom_call.1} parent=5 // pred_check
        %p638 = pneg %p637
      $region70: #{tpu_custom_call.1} parent=5 // pred_check_branch
        %640 = sbr.rel (%p638) target = $region72
      $region71: #{tpu_custom_call.1} parent=5 // pred_region
        %s641 = ssub.s32 %s15, 2
      $region72: #{tpu_custom_call.1} parent=5 // pred_fallthru
        _
    $region6: #{tpu_custom_call.1} parent=1 // loop_footer
      %s19 = sadd.s32 1, %s15
    $region7: #{tpu_custom_call.1} parent=1 // loop_footer_branch
      %14 = sbr.rel target = $region3
    $region8: #{tpu_custom_call.1} parent=1 // loop_exit
      _
    %642 = vsyncpa [#allocation4], 1
    %s643 = scalar_lea.sflag [#allocation4], 1
    %644 = vsyncpa %s643, 1
    %645 = vsyncpa [#allocation6], 1

</llo_original>
